<compile_context>
chip_gen: v5e
topology: v5e:2x2
jax: 0.10.0
libtpu: 0.0.40
codegen_flags: <defaults>
</compile_context>

<pallas_src>
import math

import jax
import jax.numpy as jnp
from jax.experimental import pallas as pl
from jax.experimental.pallas import tpu as pltpu

# Synthetic irreps:  irreps_x = "8x0e + 8x1o",  irreps_out = "16x0e + 16x1o"
IRREPS_X = [(8, 0), (8, 1)]      # (multiplicity, l)
IRREPS_OUT = [(16, 0), (16, 1)]  # same l's (e3nn Linear only connects equal irreps)


def build_full_weight(weights, irreps_x=IRREPS_X, irreps_out=IRREPS_OUT):
    """Block-diagonal Kronecker-expanded weight with 1/sqrt(mul_in) folded in.

    e3nn flattens each irrep block multiplicity-major ([mul, 2l+1] -> mul*(2l+1)), so the
    per-l block is (W_l / sqrt(mul_in)) ⊗ I_{2l+1}:
        W_block[u*(2l+1)+m, w*(2l+1)+m'] = W_l[u, w] * δ_{m,m'} / sqrt(mul_in)
    The full Linear is block-diagonal over irrep types -> a single x @ W_full.
    """
    dim_x = sum(mul * (2 * l + 1) for mul, l in irreps_x)
    dim_out = sum(mul * (2 * l + 1) for mul, l in irreps_out)
    W = jnp.zeros((dim_x, dim_out), dtype=jnp.float32)
    r = c = 0
    for (mul_in, l), (mul_out, l_out), w in zip(irreps_x, irreps_out, weights):
        assert l == l_out, "e3nn Linear only connects equal irreps"
        d = 2 * l + 1
        blk = jnp.kron(w.astype(jnp.float32) / math.sqrt(mul_in),
                       jnp.eye(d, dtype=jnp.float32))
        W = W.at[r:r + mul_in * d, c:c + mul_out * d].set(blk)
        r += mul_in * d
        c += mul_out * d
    return W


def _linear_kernel(x_ref, w_ref, o_ref):
    # One MXU matmul per row-tile; bf16 inputs, f32 accumulation, f32 output.
    o_ref[...] = jnp.dot(x_ref[...], w_ref[...], preferred_element_type=jnp.float32)


def self_connection_mace_intro(x, w_full, *, tile_n=512):
    """Forward: SELF_CONNECTION_TEMP = x @ W_full. x: [N, dim_x] -> [N, dim_out] (f32)."""
    N, dim_x = x.shape
    dim_out = w_full.shape[1]

    # bf16 at the pallas_call boundary (memory-bound op), f32 accumulation inside.
    x_bf = x.astype(jnp.bfloat16)
    w_bf = w_full.astype(jnp.bfloat16)

    # Row tile: multiple of 8 (sublane), capped for VMEM (well under v7x 64 MiB budget).
    tile_n = min(tile_n, max(8, ((N + 7) // 8) * 8))
    n_pad = ((N + tile_n - 1) // tile_n) * tile_n
    if n_pad != N:
        x_bf = jnp.pad(x_bf, ((0, n_pad - N), (0, 0)))
    grid = (n_pad // tile_n,)

    cost = pl.CostEstimate(
        flops=2 * n_pad * dim_x * dim_out,
        transcendentals=0,
        bytes_accessed=x_bf.size * 2 + w_bf.size * 2 + n_pad * dim_out * 4,
    )

    out = pl.pallas_call(
        _linear_kernel,
        out_shape=jax.ShapeDtypeStruct((n_pad, dim_out), jnp.float32),
        grid=grid,
        in_specs=[
            pl.BlockSpec((tile_n, dim_x), lambda i: (i, 0)),    # row tile of x
            pl.BlockSpec((dim_x, dim_out), lambda i: (0, 0)),   # full weight, resident
        ],
        out_specs=pl.BlockSpec((tile_n, dim_out), lambda i: (i, 0)),
        compiler_params=pltpu.CompilerParams(dimension_semantics=("parallel",)),
        cost_estimate=cost,
    )(x_bf, w_bf)
    return out[:N]


def _reference(x, weights):
    """Pure-JAX f32 reference of the e3nn Linear semantics (per-irrep mixing)."""
    N = x.shape[0]
    outs = []
    off = 0
    for (mul_in, l), (mul_out, _), w in zip(IRREPS_X, IRREPS_OUT, weights):
        d = 2 * l + 1
        blk = x[:, off:off + mul_in * d].reshape(N, mul_in, d)
        off += mul_in * d
        o = jnp.einsum("num,uw->nwm", blk, w) / math.sqrt(mul_in)
        outs.append(o.reshape(N, mul_out * d))
    return jnp.concatenate(outs, axis=-1)


if __name__ == "__main__":
    key = jax.random.PRNGKey(0)
    k_x, k_w0, k_w1 = jax.random.split(key, 3)

    N = 8  # number of nodes
    dim_x = sum(mul * (2 * l + 1) for mul, l in IRREPS_X)      # 8 + 24 = 32
    dim_out = sum(mul * (2 * l + 1) for mul, l in IRREPS_OUT)  # 16 + 48 = 64

    x = jax.random.normal(k_x, (N, dim_x), dtype=jnp.float32)
    weights = [
        jax.random.normal(k_w0, (IRREPS_X[0][0], IRREPS_OUT[0][0]), dtype=jnp.float32),
        jax.random.normal(k_w1, (IRREPS_X[1][0], IRREPS_OUT[1][0]), dtype=jnp.float32),
    ]

    w_full = build_full_weight(weights)

    # 1) Layout check (f32, exact): block-diagonal Kron weight reproduces e3nn semantics.
    ref_e3nn = _reference(x, weights)
    ref_blockdiag = x @ w_full
    assert jnp.allclose(ref_blockdiag, ref_e3nn, atol=1e-5, rtol=1e-5), \
        "Kronecker/block-diagonal weight layout mismatch vs e3nn reference"

    # 2) Kernel check: compare against the same computation on bf16-rounded inputs (f32 accum),
    #    plus a loose check vs the pure-f32 reference (bf16 input rounding tolerance).
    out = self_connection_mace_intro(x, w_full)
    out = jax.block_until_ready(out)
    assert out.shape == (N, dim_out), out.shape

    x_q = x.astype(jnp.bfloat16).astype(jnp.float32)
    w_q = w_full.astype(jnp.bfloat16).astype(jnp.float32)
    ref_bf16 = x_q @ w_q
    assert jnp.allclose(out, ref_bf16, atol=1e-4, rtol=1e-4), "kernel mismatch vs bf16 reference"
    assert jnp.allclose(out, ref_e3nn, atol=5e-2, rtol=5e-2), "kernel mismatch vs f32 reference"

    print("KERNEL_OK")
</pallas_src>

<mosaic_0001>
module attributes {stable_mosaic.version = 11 : i64} {
  func.func @_linear_kernel(%arg0: i32, %arg1: memref<8x32xbf16, #tpu.memory_space<vmem>>, %arg2: memref<32x64xbf16, #tpu.memory_space<vmem>>, %arg3: memref<8x64xf32, #tpu.memory_space<vmem>>) attributes {dimension_semantics = [#tpu.dimension_semantics<parallel>], iteration_bounds = array<i64: 1>, scalar_prefetch = 0 : i64, scratch_operands = 0 : i64, tpu.core_type = #tpu.core_type<tc>, window_params = [{transform_indices = @transform_0, window_bounds = array<i64: 8, 32>}, {pipeline_mode = #tpu.pipeline_mode<synchronous>, transform_indices = @transform_1, window_bounds = array<i64: 32, 64>}, {transform_indices = @transform_2, window_bounds = array<i64: 8, 64>}]} {
    %c0 = arith.constant 0 : index
    %c0_0 = arith.constant 0 : index
    %0 = vector.load %arg1[%c0, %c0_0] : memref<8x32xbf16, #tpu.memory_space<vmem>>, vector<8x32xbf16>
    %c0_1 = arith.constant 0 : index
    %c0_2 = arith.constant 0 : index
    %1 = vector.load %arg2[%c0_1, %c0_2] : memref<32x64xbf16, #tpu.memory_space<vmem>>, vector<32x64xbf16>
    %cst = arith.constant dense<0.000000e+00> : vector<8x64xf32>
    %2 = tpu.matmul %0, %1, %cst {dimension_numbers = #tpu.dot_dimension_numbers<[1], [0], [0], [1], [0, 0, 1, 1], [], []>} : vector<8x32xbf16>, vector<32x64xbf16>, vector<8x64xf32> -> vector<8x64xf32>
    %c0_3 = arith.constant 0 : index
    %c0_4 = arith.constant 0 : index
    %3 = vector.load %arg3[%c0_3, %c0_4] : memref<8x64xf32, #tpu.memory_space<vmem>>, vector<8x64xf32>
    tpu.vector_store %arg3[%c0_3, %c0_4], %2 {strides = array<i32>} : memref<8x64xf32, #tpu.memory_space<vmem>>, vector<8x64xf32>,
    return
  }
  func.func @transform_0(%arg0: i32) -> (i32, i32) {
    %c0_i32 = arith.constant 0 : i32
    %c0_i32_0 = arith.constant 0 : i32
    return %arg0, %c0_i32 : i32, i32
  }
  func.func @transform_1(%arg0: i32) -> (i32, i32) {
    %c0_i32 = arith.constant 0 : i32
    %c0_i32_0 = arith.constant 0 : i32
    %c0_i32_1 = arith.constant 0 : i32
    return %c0_i32, %c0_i32_0 : i32, i32
  }
  func.func @transform_2(%arg0: i32) -> (i32, i32) {
    %c0_i32 = arith.constant 0 : i32
    %c0_i32_0 = arith.constant 0 : i32
    return %arg0, %c0_i32 : i32, i32
  }
}

</mosaic_0001>

<llo_original>
// kernel: tpu_custom_call.1
$region0: #{tpu_custom_call.1}
  #allocation0 [shape = 'u32[]', space=smem, size = 0x4, offset = 0x4, fixed_abs, tag = 'smem constant byte address 0x4 - core index']
  #allocation1 [shape = 'u32[72,128]{1,0:T(1,128)}', space=vmem, size = 0x9000, scoped, tag = 'internal scratch']
  %s0 = inlined_call_operand.hbm [shape: bf16[8,32], index: 0, kind: input, shape index: {}]
  %s1 = inlined_call_operand.hbm [shape: bf16[32,64], index: 1, kind: input, shape index: {}]
  %s2 = inlined_call_operand.hbm [shape: f32[8,64], index: 2, kind: output, shape index: {}]
  %s3 = sld [smem:[#allocation0]]
  $region26: #{tpu_custom_call.1} parent=0
    _
  %s5 = ssub.s32 1, %s3
  %s6 = scalar_select 0, %s5, %s3
  $region1: #{tpu_custom_call.1} parent=0
    #allocation2 [shape = 'u8[2048]{0}', space=vmem, size = 0x800, scoped, tag = 'input window, operand 0, single buffered']
    #allocation3 [shape = 's32[1]{0}', space=sflag, size = 0x4, scoped, tag = 'scoped memory for tpu_custom_call.1']
    #allocation4 [shape = 's32[1]{0}', space=sflag, size = 0x4, scoped, tag = 'scoped memory for tpu_custom_call.1']
    #allocation5 [shape = 'u8[8192]{0}', space=vmem, size = 0x2000, scoped, tag = 'input window, operand 1, single buffered']
    #allocation6 [shape = 's32[1]{0}', space=sflag, size = 0x4, scoped, tag = 'scoped memory for tpu_custom_call.1']
    #allocation7 [shape = 'u8[4096]{0}', space=vmem, size = 0x1000, scoped, tag = 'output window, operand 0, single buffered']
    %7 = vsyncpa [#allocation3], 0
    %8 = vsyncpa [#allocation6], 0
    %9 = vsyncpa [#allocation4], 0
    // Predicated region
    $region2: #{tpu_custom_call.1} parent=1 // pred_check
      _
    $region3: #{tpu_custom_call.1} parent=1 // pred_check_branch
      %11 = sbr.rel (0) target = $region5
    $region4: #{tpu_custom_call.1} parent=1 // pred_region
      %13 = vsyncadd [#allocation3], 0
      %s15 = sshll.u32 %s0, 4
      %s16 = int_to_ptr.hbm [resolvable:$true] %s15
      %s17 = sshll.u32 [#allocation2], 4
      %s18 = int_to_ptr.vmem [resolvable:$true] %s17
      %20 = dma.hbm_to_vmem [thread:$0]  %s16, 64, %s18, [#allocation3]
    $region5: #{tpu_custom_call.1} parent=1 // pred_fallthru
      _
    // Predicated region
    $region6: #{tpu_custom_call.1} parent=1 // pred_check
      _
    $region7: #{tpu_custom_call.1} parent=1 // pred_check_branch
      %22 = sbr.rel (0) target = $region9
    $region8: #{tpu_custom_call.1} parent=1 // pred_region
      %24 = vsyncadd [#allocation6], 0
      %s25 = sshll.u32 %s1, 4
      %s26 = int_to_ptr.hbm [resolvable:$true] %s25
      %s27 = sshll.u32 [#allocation5], 4
      %s28 = int_to_ptr.vmem [resolvable:$true] %s27
      %33 = dma.hbm_to_vmem [thread:$0]  %s26, 256, %s28, [#allocation6], 64, 64, 4
    $region9: #{tpu_custom_call.1} parent=1 // pred_fallthru
      _
    // Predicated region
    $region10: #{tpu_custom_call.1} parent=1 // pred_check
      _
    $region11: #{tpu_custom_call.1} parent=1 // pred_check_branch
      %35 = sbr.rel (0) target = $region13
    $region12: #{tpu_custom_call.1} parent=1 // pred_region
      %37 = dma.done [#allocation3], 64
    $region13: #{tpu_custom_call.1} parent=1 // pred_fallthru
      _
    // Predicated region
    $region14: #{tpu_custom_call.1} parent=1 // pred_check
      _
    $region15: #{tpu_custom_call.1} parent=1 // pred_check_branch
      %39 = sbr.rel (0) target = $region17
    $region16: #{tpu_custom_call.1} parent=1 // pred_region
      %41 = dma.done [#allocation6], 256
    $region17: #{tpu_custom_call.1} parent=1 // pred_fallthru
      _
    %v43 = vld [vmem:[#allocation2] sm:$0xf]
    %v44 = vld [vmem:[#allocation5] sm:$0xf]
    %v45 = vld [vmem:[#allocation5 + $0x4] sm:$0xf]
    %v46 = vld [vmem:[#allocation5 + $0x8] sm:$0xf]
    %v47 = vld [vmem:[#allocation5 + $0xc] sm:$0xf]
    %v52 = vunpack.c.l.b16 %v44
    %v53 = vunpack.c.l.b16 %v45
    %v54 = vunpack.c.l.b16 %v46
    %v55 = vunpack.c.l.b16 %v47
    %v56 = vpack.c.b16 %v53, %v52
    %v57 = vpack.c.b16 %v55, %v54
    %vm60 = vcmask 261120
    %v62 = vsel %vm60, %v43, 0
    %64 = vmatpush.bf16.msra.mxu0 0
    %65 = vmatpush.bf16.msra.mxu0 0
    %66 = vmatpush.bf16.msra.mxu0 0
    %67 = vmatpush.bf16.msra.mxu0 0
    %68 = vmatpush.bf16.msra.mxu0 0
    %69 = vmatpush.bf16.msra.mxu0 0
    %70 = vmatpush.bf16.msra.mxu0 %v57
    %71 = vmatpush.bf16.msra.mxu0 %v56
    %72 = vmatmul.bf16.gmra.mxu0 %v62
    %v73 = vpop.f32.mrf.mxu0
    %v74 = vadd.f32 0.0, %v73
    %v75 = vpop.f32.mrf.mxu0
    %76 = vdwg.mxu0
    %vm77 = vcmask 523264
    %78 = vst.msk [vmem:[#allocation7] sm:$0xff] %vm77, %v74
    // Predicated region
    $region18: #{tpu_custom_call.1} parent=1 // pred_check
      _
    $region19: #{tpu_custom_call.1} parent=1 // pred_check_branch
      %80 = sbr.rel (0) target = $region21
    $region20: #{tpu_custom_call.1} parent=1 // pred_region
      %82 = vsyncadd [#allocation4], 0
      %s84 = sshll.u32 [#allocation7], 4
      %s85 = int_to_ptr.vmem [resolvable:$true] %s84
      %s86 = sshll.u32 %s2, 4
      %s87 = int_to_ptr.hbm [resolvable:$true] %s86
      %89 = dma.vmem_to_hbm [thread:$0]  %s85, 128, %s87, [#allocation4]
    $region21: #{tpu_custom_call.1} parent=1 // pred_fallthru
      _
    // Predicated region
    $region22: #{tpu_custom_call.1} parent=1 // pred_check
      _
    $region23: #{tpu_custom_call.1} parent=1 // pred_check_branch
      %91 = sbr.rel (0) target = $region25
    $region24: #{tpu_custom_call.1} parent=1 // pred_region
      %93 = dma.done [#allocation4], 128
    $region25: #{tpu_custom_call.1} parent=1 // pred_fallthru
      _
    %94 = vsyncpa [#allocation3], 1
    %95 = vsyncpa [#allocation6], 1
    %96 = vsyncpa [#allocation4], 1

</llo_original>
